<compile_context>
chip_gen: v7x
topology: tpu7x:2x2x1
jax: 0.10.0
libtpu: 0.0.40
codegen_flags: <defaults>
</compile_context>

<pallas_src>
import functools

import jax
import jax.numpy as jnp
from jax import lax
from jax.experimental import pallas as pl
from jax.experimental.pallas import tpu as pltpu


_LANES = 1024                        # lane-dense minor dim (multiple of 128)
_MAX_ROWS_F32 = 1024                 # 1024x1024 f32 tile = 4 MiB per input
_MAX_ROWS_BF16 = 2048                # 2048x1024 bf16 tile = 4 MiB per input
_PALLAS_MIN_ELEMENTS = 256 * 1024    # below this a fused XLA reduction wins
_VMEM_LIMIT_BYTES = 48 * 1024 * 1024 # < v7x 64 MiB physical; fine on v5e/v6e


def _round_up(x, m):
    return (x + m - 1) // m * m


def _mae_partial_kernel(pred_ref, gt_ref, mask_ref, out_ref, *,
                        total_rows, tile_rows):
    """Masked |gt - pred| partial sum for one lane-dense tile.

    Emits a (1, _LANES) f32 partial row per grid step (sublane reduce only),
    so there is no shared accumulator / cross-lane reduce on the per-step
    critical path and the grid axis can be "parallel" (v7x dual-TC).
    """
    step = pl.program_id(0)

    diff = jnp.abs(gt_ref[...].astype(jnp.float32) -
                   pred_ref[...].astype(jnp.float32))
    x = jnp.where(mask_ref[...] != 0, diff, 0.0)

    # The final grid step may overhang the array in the sublane dim; the
    # overhang region of the block holds undefined data, so zero it with a
    # select (not a multiply, so NaN garbage cannot propagate).  This branch
    # is statically removed when the rows divide evenly.
    if total_rows % tile_rows != 0:
        rows_valid = total_rows - step * tile_rows
        row_ids = lax.broadcasted_iota(jnp.int32, x.shape, 0)
        x = jnp.where(row_ids < rows_valid, x, 0.0)

    out_ref[...] = jnp.sum(x, axis=0, keepdims=True)


def _keypoints_mae_loss_pallas(pred, gt, validity):
    dim = pred.shape[-1]
    total = pred.size

    # Flatten (free); pred/gt keep their HBM dtype (bf16 stays bf16).
    pred_f = pred.reshape(-1)
    gt_f = gt.reshape(-1)
    # 1-byte binary mask instead of a full compute-dtype broadcast.
    mask_f = (jnp.broadcast_to(validity != 0, pred.shape)
              .reshape(-1).astype(jnp.int8))

    # Lane alignment: pad only when the flat length is not already a multiple
    # of _LANES (padded mask is 0 -> contributes nothing).  The ragged row
    # tail is handled in-kernel, never by padding to a tile multiple.
    padded = _round_up(total, _LANES)
    if padded != total:
        extra = padded - total
        pred_f = jnp.pad(pred_f, (0, extra))
        gt_f = jnp.pad(gt_f, (0, extra))
        mask_f = jnp.pad(mask_f, (0, extra))
    total_rows = padded // _LANES

    is_bf16 = (pred.dtype == jnp.bfloat16 and gt.dtype == jnp.bfloat16)
    max_rows = _MAX_ROWS_BF16 if is_bf16 else _MAX_ROWS_F32
    row_unit = 16 if is_bf16 else 8
    tile_rows = min(max_rows, _round_up(total_rows, row_unit))
    if tile_rows > total_rows:
        tile_rows = total_rows          # full-extent block: always legal
    n_tiles = -(-total_rows // tile_rows)

    pred_2d = pred_f.reshape(total_rows, _LANES)
    gt_2d = gt_f.reshape(total_rows, _LANES)
    mask_2d = mask_f.reshape(total_rows, _LANES)

    in_block = pl.BlockSpec((tile_rows, _LANES), lambda i: (i, 0))
    out_block = pl.BlockSpec((1, _LANES), lambda i: (i, 0))

    kernel = functools.partial(_mae_partial_kernel,
                               total_rows=total_rows, tile_rows=tile_rows)
    partials = pl.pallas_call(
        kernel,
        out_shape=jax.ShapeDtypeStruct((n_tiles, _LANES), jnp.float32),
        grid=(n_tiles,),
        in_specs=[in_block, in_block, in_block],
        out_specs=out_block,
        compiler_params=pltpu.CompilerParams(
            dimension_semantics=("parallel",),
            vmem_limit_bytes=_VMEM_LIMIT_BYTES),
    )(pred_2d, gt_2d, mask_2d)

    # XLA epilogue: tiny reductions + the final divide.  The denominator uses
    # the original validity values exactly (no binary assumption there).
    numerator = jnp.sum(partials)
    vsum = jnp.sum(validity.astype(jnp.float32))
    return numerator / (dim * jnp.maximum(jnp.float32(1.0), vsum))


def _keypoints_mae_loss_ref(pred, gt, validity):
    """Pure-JAX mirror of KeypointsMAELoss.forward (f32 math)."""
    dim = pred.shape[-1]
    pred = pred.astype(jnp.float32)
    gt = gt.astype(jnp.float32)
    validity = validity.astype(jnp.float32)
    loss = jnp.sum(jnp.abs(gt - pred) * validity)
    return loss / (dim * jnp.maximum(jnp.float32(1.0), jnp.sum(validity)))


def keypoints_mae_loss(keypoints_pred, keypoints_gt, keypoints_binary_validity,
                       *, use_pallas=None):
    """JAX wrapper mirroring KeypointsMAELoss.forward.

    Small/medium problems go to the fused XLA expression (the pallas_call is
    pure launch/copy overhead there); large ones run the gridded lane-dense
    Pallas streaming reduction.
    """
    if use_pallas is None:
        use_pallas = keypoints_pred.size >= _PALLAS_MIN_ELEMENTS
    if not use_pallas:
        return _keypoints_mae_loss_ref(
            keypoints_pred, keypoints_gt, keypoints_binary_validity)
    return _keypoints_mae_loss_pallas(
        keypoints_pred, keypoints_gt, keypoints_binary_validity)


if __name__ == "__main__":
    key = jax.random.PRNGKey(0)
    k1, k2, k3, k4, k5, k6, k7, k8, k9 = jax.random.split(key, 9)

    # 1) Module-typical small shape (batch=2, 17 keypoints, 3 coords): run the
    #    Pallas kernel (forced) and the size-gated path; both must match.
    B, N, D = 2, 17, 3
    pred_s = jax.random.normal(k1, (B, N, D), dtype=jnp.float32)
    gt_s = jax.random.normal(k2, (B, N, D), dtype=jnp.float32)
    val_s = (jax.random.uniform(k3, (B, N, 1)) > 0.3).astype(jnp.float32)

    ref_s = _keypoints_mae_loss_ref(pred_s, gt_s, val_s)
    out_kernel_s = keypoints_mae_loss(pred_s, gt_s, val_s, use_pallas=True)
    out_gated_s = keypoints_mae_loss(pred_s, gt_s, val_s)
    jax.block_until_ready((out_kernel_s, out_gated_s))
    assert jnp.allclose(out_kernel_s, ref_s, rtol=1e-5, atol=1e-6), (out_kernel_s, ref_s)
    assert jnp.allclose(out_gated_s, ref_s, rtol=1e-5, atol=1e-6), (out_gated_s, ref_s)

    # 2) Lane-aligned f32 shape that exercises the multi-tile "parallel" grid
    #    and the in-kernel ragged-row-tail masking (1200 rows -> 2 tiles).
    B2, N2, D2 = 16, 25600, 3
    pred_l = jax.random.normal(k4, (B2, N2, D2), dtype=jnp.float32)
    gt_l = jax.random.normal(k5, (B2, N2, D2), dtype=jnp.float32)
    val_l = (jax.random.uniform(k6, (B2, N2, 1)) > 0.3).astype(jnp.float32)

    ref_l = _keypoints_mae_loss_ref(pred_l, gt_l, val_l)
    out_l = keypoints_mae_loss(pred_l, gt_l, val_l, use_pallas=True)
    jax.block_until_ready(out_l)
    assert jnp.allclose(out_l, ref_l, rtol=1e-4, atol=1e-6), (out_l, ref_l)

    # 3) bf16 inputs with a non-lane-aligned total (exercises the fallback pad
    #    path); kernel upcasts to f32 in VMEM so it tracks the f32 reference.
    B3, N3, D3 = 16, 1500, 3
    pred_b = jax.random.normal(k7, (B3, N3, D3), dtype=jnp.float32).astype(jnp.bfloat16)
    gt_b = jax.random.normal(k8, (B3, N3, D3), dtype=jnp.float32).astype(jnp.bfloat16)
    val_b = (jax.random.uniform(k9, (B3, N3, 1)) > 0.3).astype(jnp.bfloat16)

    ref_b = _keypoints_mae_loss_ref(pred_b, gt_b, val_b)
    out_b = keypoints_mae_loss(pred_b, gt_b, val_b, use_pallas=True)
    jax.block_until_ready(out_b)
    assert jnp.allclose(out_b, ref_b, rtol=1e-4, atol=1e-4), (out_b, ref_b)

    print("KERNEL_OK")
</pallas_src>

<mosaic_0001>
module attributes {stable_mosaic.version = 11 : i64} {
  func.func @_mae_partial_kernel(%arg0: i32, %arg1: memref<1x1024xf32, #tpu.memory_space<vmem>>, %arg2: memref<1x1024xf32, #tpu.memory_space<vmem>>, %arg3: memref<1x1024xi8, #tpu.memory_space<vmem>>, %arg4: memref<1x1024xf32, #tpu.memory_space<vmem>>) attributes {dimension_semantics = [#tpu.dimension_semantics<parallel>], iteration_bounds = array<i64: 1>, scalar_prefetch = 0 : i64, scratch_operands = 0 : i64, tpu.core_type = #tpu.core_type<tc>, window_params = [{transform_indices = @transform_0, window_bounds = array<i64: 1, 1024>}, {transform_indices = @transform_1, window_bounds = array<i64: 1, 1024>}, {transform_indices = @transform_2, window_bounds = array<i64: 1, 1024>}, {transform_indices = @transform_3, window_bounds = array<i64: 1, 1024>}]} {
    %c0 = arith.constant 0 : index
    %c0_0 = arith.constant 0 : index
    %0 = vector.load %arg2[%c0, %c0_0] : memref<1x1024xf32, #tpu.memory_space<vmem>>, vector<1x1024xf32>
    %c0_1 = arith.constant 0 : index
    %c0_2 = arith.constant 0 : index
    %1 = vector.load %arg1[%c0_1, %c0_2] : memref<1x1024xf32, #tpu.memory_space<vmem>>, vector<1x1024xf32>
    %2 = arith.subf %0, %1 : vector<1x1024xf32>
    %3 = math.absf %2 : vector<1x1024xf32>
    %c0_3 = arith.constant 0 : index
    %c0_4 = arith.constant 0 : index
    %4 = vector.load %arg3[%c0_3, %c0_4] : memref<1x1024xi8, #tpu.memory_space<vmem>>, vector<1x1024xi8>
    %c0_i8 = arith.constant 0 : i8
    %5 = vector.broadcast %c0_i8 : i8 to vector<1x1024xi8>
    %6 = arith.cmpi ne, %4, %5 : vector<1x1024xi8>
    %cst = arith.constant 0.000000e+00 : f32
    %7 = vector.broadcast %cst : f32 to vector<1x1024xf32>
    %8 = arith.select %6, %3, %7 : vector<1x1024xi1>, vector<1x1024xf32>
    %cst_5 = arith.constant dense<0.000000e+00> : vector<1024xf32>
    %9 = vector.multi_reduction <add>, %8, %cst_5 [0] : vector<1x1024xf32> to vector<1024xf32>
    %10 = vector.shape_cast %9 : vector<1024xf32> to vector<1x1024xf32>
    %c0_6 = arith.constant 0 : index
    %c0_7 = arith.constant 0 : index
    %11 = vector.load %arg4[%c0_6, %c0_7] : memref<1x1024xf32, #tpu.memory_space<vmem>>, vector<1x1024xf32>
    tpu.vector_store %arg4[%c0_6, %c0_7], %10 {strides = array<i32>} : memref<1x1024xf32, #tpu.memory_space<vmem>>, vector<1x1024xf32>,
    return
  }
  func.func @transform_0(%arg0: i32) -> (i32, i32) {
    %c0_i32 = arith.constant 0 : i32
    %c0_i32_0 = arith.constant 0 : i32
    return %arg0, %c0_i32 : i32, i32
  }
  func.func @transform_1(%arg0: i32) -> (i32, i32) {
    %c0_i32 = arith.constant 0 : i32
    %c0_i32_0 = arith.constant 0 : i32
    return %arg0, %c0_i32 : i32, i32
  }
  func.func @transform_2(%arg0: i32) -> (i32, i32) {
    %c0_i32 = arith.constant 0 : i32
    %c0_i32_0 = arith.constant 0 : i32
    return %arg0, %c0_i32 : i32, i32
  }
  func.func @transform_3(%arg0: i32) -> (i32, i32) {
    %c0_i32 = arith.constant 0 : i32
    %c0_i32_0 = arith.constant 0 : i32
    return %arg0, %c0_i32 : i32, i32
  }
}

</mosaic_0001>

<llo_original>
// kernel: tpu_custom_call.1
$region0: #{tpu_custom_call.1}
  #allocation0 [shape = 'u32[]', space=smem, size = 0x4, offset = 0x4, fixed_abs, tag = 'smem constant byte address 0x4 - core index']
  #allocation1 [shape = 'u32[144,128]{1,0:T(1,128)}', space=vmem, size = 0x12000, scoped, tag = 'internal scratch']
  %s0 = inlined_call_operand.hbm [shape: f32[1,1024], index: 0, kind: input, shape index: {}]
  %s1 = inlined_call_operand.hbm [shape: f32[1,1024], index: 1, kind: input, shape index: {}]
  %s2 = inlined_call_operand.hbm [shape: s8[1,1024], index: 2, kind: input, shape index: {}]
  %s3 = inlined_call_operand.hbm [shape: f32[1,1024], index: 3, kind: output, shape index: {}]
  %s4 = sld [smem:[#allocation0]]
  $region34: #{tpu_custom_call.1} parent=0
    _
  %s6 = ssub.s32 1, %s4
  %s7 = scalar_select 0, %s6, %s4
  $region1: #{tpu_custom_call.1} parent=0
    #allocation2 [shape = 'u8[4096]{0}', space=vmem, size = 0x1000, scoped, tag = 'input window, operand 0, single buffered']
    #allocation3 [shape = 's32[1]{0}', space=sflag, size = 0x4, scoped, tag = 'scoped memory for tpu_custom_call.1']
    #allocation4 [shape = 's32[1]{0}', space=sflag, size = 0x4, scoped, tag = 'scoped memory for tpu_custom_call.1']
    #allocation5 [shape = 'u8[4096]{0}', space=vmem, size = 0x1000, scoped, tag = 'input window, operand 1, single buffered']
    #allocation6 [shape = 's32[1]{0}', space=sflag, size = 0x4, scoped, tag = 'scoped memory for tpu_custom_call.1']
    #allocation7 [shape = 'u8[4096]{0}', space=vmem, size = 0x1000, scoped, tag = 'input window, operand 2, single buffered']
    #allocation8 [shape = 'u8[4096]{0}', space=vmem, size = 0x1000, scoped, tag = 'output window, operand 0, single buffered']
    %8 = vsyncpa [#allocation3], 0
    %9 = vsyncpa [#allocation6], 0
    %10 = vsyncpa [#allocation4], 0
    // Predicated region
    $region2: #{tpu_custom_call.1} parent=1 // pred_check
      _
    $region3: #{tpu_custom_call.1} parent=1 // pred_check_branch
      %12 = sbr.rel (0) target = $region5
    $region4: #{tpu_custom_call.1} parent=1 // pred_region
      %s14 = ssub.s32 128, 128
      %15 = vsyncadd [#allocation3], %s14
      %s17 = sshll.u32 [#allocation2], 4
      %s18 = int_to_ptr.vmem [resolvable:$true] %s17
      %20 = dma.hbm_to_vmem [thread:$0]  %s0, 128, %s18, [#allocation3]
    $region5: #{tpu_custom_call.1} parent=1 // pred_fallthru
      _
    // Predicated region
    $region6: #{tpu_custom_call.1} parent=1 // pred_check
      _
    $region7: #{tpu_custom_call.1} parent=1 // pred_check_branch
      %22 = sbr.rel (0) target = $region9
    $region8: #{tpu_custom_call.1} parent=1 // pred_region
      %s24 = ssub.s32 128, 128
      %25 = vsyncadd [#allocation6], %s24
      %s27 = sshll.u32 [#allocation5], 4
      %s28 = int_to_ptr.vmem [resolvable:$true] %s27
      %30 = dma.hbm_to_vmem [thread:$0]  %s1, 128, %s28, [#allocation6]
    $region9: #{tpu_custom_call.1} parent=1 // pred_fallthru
      _
    // Predicated region
    $region10: #{tpu_custom_call.1} parent=1 // pred_check
      _
    $region11: #{tpu_custom_call.1} parent=1 // pred_check_branch
      %32 = sbr.rel (0) target = $region13
    $region12: #{tpu_custom_call.1} parent=1 // pred_region
      %s34 = ssub.s32 128, 128
      %35 = vsyncadd [#allocation6], %s34
      %s37 = sshll.u32 [#allocation7], 4
      %s38 = int_to_ptr.vmem [resolvable:$true] %s37
      %40 = dma.hbm_to_vmem [thread:$0]  %s2, 128, %s38, [#allocation6]
    $region13: #{tpu_custom_call.1} parent=1 // pred_fallthru
      _
    // Predicated region
    $region14: #{tpu_custom_call.1} parent=1 // pred_check
      _
    $region15: #{tpu_custom_call.1} parent=1 // pred_check_branch
      %42 = sbr.rel (0) target = $region17
    $region16: #{tpu_custom_call.1} parent=1 // pred_region
      %43 = dma.done [#allocation3], 128
    $region17: #{tpu_custom_call.1} parent=1 // pred_fallthru
      _
    // Predicated region
    $region18: #{tpu_custom_call.1} parent=1 // pred_check
      _
    $region19: #{tpu_custom_call.1} parent=1 // pred_check_branch
      %45 = sbr.rel (0) target = $region21
    $region20: #{tpu_custom_call.1} parent=1 // pred_region
      %46 = dma.done [#allocation6], 128
    $region21: #{tpu_custom_call.1} parent=1 // pred_fallthru
      _
    // Predicated region
    $region22: #{tpu_custom_call.1} parent=1 // pred_check
      _
    $region23: #{tpu_custom_call.1} parent=1 // pred_check_branch
      %48 = sbr.rel (0) target = $region25
    $region24: #{tpu_custom_call.1} parent=1 // pred_region
      %49 = dma.done [#allocation6], 128
    $region25: #{tpu_custom_call.1} parent=1 // pred_fallthru
      _
    %v52 = vld [vmem:[#allocation5] sm:$0xff]
    %v53 = vld [vmem:[#allocation2] sm:$0xff]
    %v54 = vsub.f32 %v52, %v53
    %v55 = vand.u32 2147483647, %v54
    %v56 = vld [vmem:[#allocation7] sm:$0xff]
    %vm57 = vnez %v56
    %v58 = vsel %vm57, 16843009, 0
    %v59 = vunpack.c.0.s8 %v58
    %v60 = vunpack.c.1.s8 %v58
    %v61 = vunpack.c.2.s8 %v58
    %v62 = vunpack.c.3.s8 %v58
    %vm63 = vcmp.ne.s32.totalorder %v59, 0
    %vm64 = vcmp.ne.s32.totalorder %v60, 0
    %vm65 = vcmp.ne.s32.totalorder %v61, 0
    %vm66 = vcmp.ne.s32.totalorder %v62, 0
    %v67 = vsel %vm63, 1, 0
    %v68 = vsel %vm64, 1, 0
    %v69 = vsel %vm65, 1, 0
    %v70 = vsel %vm66, 1, 0
    %v72 = vunpack.c.l.s4 1966171168
    %v73 = vunpack.c.0.s8 %v72
    %v74 = vlaneseq
    %v75 = vshrl.u32 %v74, 7
    %v76 = vsub.s32 %v73, %v75
    %v77 = vrot.slane %v67, %v76
    %v79 = vunpack.c.l.s4 1966171168
    %v80 = vunpack.c.0.s8 %v79
    %v81 = vlaneseq
    %v82 = vshrl.u32 %v81, 7
    %v83 = vsub.s32 %v80, %v82
    %v84 = vrot.slane %v68, %v83
    %v86 = vunpack.c.l.s4 1966171168
    %v87 = vunpack.c.0.s8 %v86
    %v88 = vlaneseq
    %v89 = vshrl.u32 %v88, 7
    %v90 = vsub.s32 %v87, %v89
    %v91 = vrot.slane %v69, %v90
    %v93 = vunpack.c.l.s4 1966171168
    %v94 = vunpack.c.0.s8 %v93
    %v95 = vlaneseq
    %v96 = vshrl.u32 %v95, 7
    %v97 = vsub.s32 %v94, %v96
    %v98 = vrot.slane %v70, %v97
    %v99 = vcombine.low %v77, %v84
    %v100 = vcombine.low %v91, %v98
    %v102 = vunpack.c.l.s4 1966171168
    %v103 = vunpack.c.0.s8 %v102
    %v104 = vlaneseq
    %v105 = vshrl.u32 %v104, 7
    %v106 = vsub.s32 %v103, %v105
    %v107 = vrot.slane %v99, %v106
    %v109 = vunpack.c.l.s4 1966171168
    %v110 = vunpack.c.0.s8 %v109
    %v111 = vlaneseq
    %v112 = vshrl.u32 %v111, 7
    %v113 = vsub.s32 %v110, %v112
    %v114 = vrot.slane %v100, %v113
    %v115 = vcombine.low %v107, %v114
    %vm116 = vcmp.ne.s32.totalorder %v115, 0
    %v117 = vsel %vm116, %v55, 0.0
    %v118 = vadd.f32 %v117, 0.0
    %119 = vst [vmem:[#allocation8] sm:$0xff] %v118
    // Predicated region
    $region26: #{tpu_custom_call.1} parent=1 // pred_check
      _
    $region27: #{tpu_custom_call.1} parent=1 // pred_check_branch
      %121 = sbr.rel (0) target = $region29
    $region28: #{tpu_custom_call.1} parent=1 // pred_region
      %s123 = ssub.s32 128, 128
      %124 = vsyncadd [#allocation4], %s123
      %s126 = sshll.u32 [#allocation8], 4
      %s127 = int_to_ptr.vmem [resolvable:$true] %s126
      %129 = dma.vmem_to_hbm [thread:$0]  %s127, 128, %s3, [#allocation4]
    $region29: #{tpu_custom_call.1} parent=1 // pred_fallthru
      _
    // Predicated region
    $region30: #{tpu_custom_call.1} parent=1 // pred_check
      _
    $region31: #{tpu_custom_call.1} parent=1 // pred_check_branch
      %131 = sbr.rel (0) target = $region33
    $region32: #{tpu_custom_call.1} parent=1 // pred_region
      %132 = dma.done [#allocation4], 128
    $region33: #{tpu_custom_call.1} parent=1 // pred_fallthru
      _
    %133 = vsyncpa [#allocation3], 1
    %134 = vsyncpa [#allocation6], 1
    %135 = vsyncpa [#allocation4], 1

</llo_original>
